<compile_context>
chip_gen: v7x
topology: tpu7x:2x2x1
jax: 0.10.0
libtpu: 0.0.40
codegen_flags: <defaults>
</compile_context>

<pallas_src>
import jax
import jax.numpy as jnp
from jax.experimental import pallas as pl
from jax.experimental.pallas import tpu as pltpu

_LANE = 128
_MAX_COLS = 8192                 # cap on slab width (elements)
_TARGET_BLOCK_BYTES = 2 * 1024 * 1024   # ~2 MiB per block, v7x-safe


def _identity_copy_kernel(x_ref, o_ref):
    # Elementwise identity: whole tile loaded, written back unchanged.
    o_ref[...] = x_ref[...]


def _resolve_shape(total, shape):
    """torch.Tensor.view shape resolution (supports a single -1)."""
    shape = list(shape)
    if -1 in shape:
        idx = shape.index(-1)
        known = 1
        for i, s in enumerate(shape):
            if i != idx:
                known *= s
        assert known > 0 and total % known == 0, \
            "view(): shape incompatible with input size"
        shape[idx] = total // known
    prod = 1
    for s in shape:
        prod *= s
    assert prod == total, "view(): shape incompatible with input size"
    return tuple(shape)


def _largest_divisor_at_most(n, cap):
    cap = max(1, min(n, cap))
    for d in range(cap, 0, -1):
        if n % d == 0:
            return d
    return 1


def view_pallas(x, shape):
    """Pallas implementation of View(shape).forward(x) == x.view(*shape)."""
    total = x.size
    target_shape = _resolve_shape(total, shape)
    if total == 0:
        return jnp.reshape(x, target_shape)

    itemsize = jnp.dtype(x.dtype).itemsize
    sublane = max(8, 32 // itemsize)        # 8 f32 / 16 bf16 / 32 int8-fp8
    min_tile = sublane * _LANE

    # Pad only to the minimum-tile multiple, and only if actually needed.
    padded = pl.cdiv(total, min_tile) * min_tile
    needs_pad = padded != total

    # Lane-dense slab (rows, cols):
    #   cols  = widest 128-multiple that divides the slab (capped at 8192),
    #   rows  = padded // cols  (a multiple of `sublane` by construction).
    m = padded // min_tile
    k = _largest_divisor_at_most(m, _MAX_COLS // _LANE)
    cols = _LANE * k
    rows = padded // cols

    # Block rows: multiple of `sublane`, divides `rows`, and keeps the block
    # around _TARGET_BLOCK_BYTES so in+out double-buffering stays well under
    # every generation's scoped VMEM limit (incl. v7x's 64 MiB physical).
    q = rows // sublane
    t_cap = max(1, _TARGET_BLOCK_BYTES // (cols * itemsize * sublane))
    t = _largest_divisor_at_most(q, t_cap)
    block_rows = sublane * t
    grid = (rows // block_rows,)

    flat = x.reshape(-1)
    if needs_pad:
        # Ragged tail: fall back to a small pad (could also be a masked last
        # block, but the common divisible case skips this path entirely).
        flat = jnp.pad(flat, (0, padded - total))
    mat = flat.reshape(rows, cols)

    out_mat = pl.pallas_call(
        _identity_copy_kernel,
        out_shape=jax.ShapeDtypeStruct(mat.shape, mat.dtype),
        grid=grid,
        in_specs=[pl.BlockSpec((block_rows, cols), lambda i: (i, 0))],
        out_specs=pl.BlockSpec((block_rows, cols), lambda i: (i, 0)),
        compiler_params=pltpu.CompilerParams(
            dimension_semantics=("parallel",),
            vmem_limit_bytes=32 * 1024 * 1024,  # safe on v5e/v6e/v7x
        ),
    )(mat)

    if needs_pad:
        return out_mat.reshape(-1)[:total].reshape(target_shape)
    return out_mat.reshape(target_shape)


if __name__ == "__main__":
    key = jax.random.PRNGKey(0)
    # Small NCHW input consistent with DRANet's typical use of View
    # (flatten feature maps before a linear layer): (2, 4, 16, 16) -> (2, -1).
    x = jax.random.normal(key, (2, 4, 16, 16), dtype=jnp.float32)
    view_shape = (2, -1)

    out = view_pallas(x, view_shape)
    out = jax.block_until_ready(out)

    ref = jnp.reshape(x, (2, -1))
    assert out.shape == ref.shape, (out.shape, ref.shape)
    assert out.dtype == ref.dtype
    assert bool(jnp.array_equal(out, ref))

    print("KERNEL_OK")
</pallas_src>

<mosaic_0001>
module attributes {stable_mosaic.version = 11 : i64} {
  func.func @_identity_copy_kernel(%arg0: i32, %arg1: memref<8x256xf32, #tpu.memory_space<vmem>>, %arg2: memref<8x256xf32, #tpu.memory_space<vmem>>) attributes {dimension_semantics = [#tpu.dimension_semantics<parallel>], iteration_bounds = array<i64: 1>, scalar_prefetch = 0 : i64, scratch_operands = 0 : i64, tpu.core_type = #tpu.core_type<tc>, window_params = [{transform_indices = @transform_0, window_bounds = array<i64: 8, 256>}, {transform_indices = @transform_1, window_bounds = array<i64: 8, 256>}]} {
    %c0 = arith.constant 0 : index
    %c0_0 = arith.constant 0 : index
    %0 = vector.load %arg1[%c0, %c0_0] : memref<8x256xf32, #tpu.memory_space<vmem>>, vector<8x256xf32>
    %c0_1 = arith.constant 0 : index
    %c0_2 = arith.constant 0 : index
    %1 = vector.load %arg2[%c0_1, %c0_2] : memref<8x256xf32, #tpu.memory_space<vmem>>, vector<8x256xf32>
    tpu.vector_store %arg2[%c0_1, %c0_2], %0 {strides = array<i32>} : memref<8x256xf32, #tpu.memory_space<vmem>>, vector<8x256xf32>,
    return
  }
  func.func @transform_0(%arg0: i32) -> (i32, i32) {
    %c0_i32 = arith.constant 0 : i32
    %c0_i32_0 = arith.constant 0 : i32
    return %arg0, %c0_i32 : i32, i32
  }
  func.func @transform_1(%arg0: i32) -> (i32, i32) {
    %c0_i32 = arith.constant 0 : i32
    %c0_i32_0 = arith.constant 0 : i32
    return %arg0, %c0_i32 : i32, i32
  }
}

</mosaic_0001>

<llo_original>
// kernel: tpu_custom_call.1
$region0: #{tpu_custom_call.1}
  #allocation0 [shape = 'u32[]', space=smem, size = 0x4, offset = 0x4, fixed_abs, tag = 'smem constant byte address 0x4 - core index']
  #allocation1 [shape = 'u32[144,128]{1,0:T(1,128)}', space=vmem, size = 0x12000, scoped, tag = 'internal scratch']
  %s0 = inlined_call_operand.hbm [shape: f32[8,256], index: 0, kind: input, shape index: {}]
  %s1 = inlined_call_operand.hbm [shape: f32[8,256], index: 1, kind: output, shape index: {}]
  %s2 = sld [smem:[#allocation0]]
  $region18: #{tpu_custom_call.1} parent=0
    _
  %s4 = ssub.s32 1, %s2
  %s5 = scalar_select 0, %s4, %s2
  $region1: #{tpu_custom_call.1} parent=0
    #allocation2 [shape = 'u8[8192]{0}', space=vmem, size = 0x2000, scoped, tag = 'input window, operand 0, single buffered']
    #allocation3 [shape = 's32[1]{0}', space=sflag, size = 0x4, scoped, tag = 'scoped memory for tpu_custom_call.1']
    #allocation4 [shape = 's32[1]{0}', space=sflag, size = 0x4, scoped, tag = 'scoped memory for tpu_custom_call.1']
    #allocation5 [shape = 'u8[8192]{0}', space=vmem, size = 0x2000, scoped, tag = 'output window, operand 0, single buffered']
    %6 = vsyncpa [#allocation3], 0
    %7 = vsyncpa [#allocation4], 0
    // Predicated region
    $region2: #{tpu_custom_call.1} parent=1 // pred_check
      _
    $region3: #{tpu_custom_call.1} parent=1 // pred_check_branch
      %9 = sbr.rel (0) target = $region5
    $region4: #{tpu_custom_call.1} parent=1 // pred_region
      %s11 = ssub.s32 256, 256
      %12 = vsyncadd [#allocation3], %s11
      %s14 = sshll.u32 [#allocation2], 4
      %s15 = int_to_ptr.vmem [resolvable:$true] %s14
      %17 = dma.hbm_to_vmem [thread:$0]  %s0, 256, %s15, [#allocation3]
    $region5: #{tpu_custom_call.1} parent=1 // pred_fallthru
      _
    // Predicated region
    $region6: #{tpu_custom_call.1} parent=1 // pred_check
      _
    $region7: #{tpu_custom_call.1} parent=1 // pred_check_branch
      %19 = sbr.rel (0) target = $region9
    $region8: #{tpu_custom_call.1} parent=1 // pred_region
      %20 = dma.done [#allocation3], 256
    $region9: #{tpu_custom_call.1} parent=1 // pred_fallthru
      _
    %v21 = vld [vmem:[#allocation2] sm:$0xff]
    %v22 = vld [vmem:[#allocation2 + $0x8] sm:$0xff]
    %23 = vst [vmem:[#allocation5] sm:$0xff] %v21
    %24 = vst [vmem:[#allocation5 + $0x8] sm:$0xff] %v22
    // Predicated region
    $region10: #{tpu_custom_call.1} parent=1 // pred_check
      _
    $region11: #{tpu_custom_call.1} parent=1 // pred_check_branch
      %26 = sbr.rel (0) target = $region13
    $region12: #{tpu_custom_call.1} parent=1 // pred_region
      %s28 = ssub.s32 256, 256
      %29 = vsyncadd [#allocation4], %s28
      %s31 = sshll.u32 [#allocation5], 4
      %s32 = int_to_ptr.vmem [resolvable:$true] %s31
      %34 = dma.vmem_to_hbm [thread:$0]  %s32, 256, %s1, [#allocation4]
    $region13: #{tpu_custom_call.1} parent=1 // pred_fallthru
      _
    // Predicated region
    $region14: #{tpu_custom_call.1} parent=1 // pred_check
      _
    $region15: #{tpu_custom_call.1} parent=1 // pred_check_branch
      %36 = sbr.rel (0) target = $region17
    $region16: #{tpu_custom_call.1} parent=1 // pred_region
      %37 = dma.done [#allocation4], 256
    $region17: #{tpu_custom_call.1} parent=1 // pred_fallthru
      _
    %38 = vsyncpa [#allocation3], 1
    %39 = vsyncpa [#allocation4], 1

</llo_original>
